<compile_context>
chip_gen: v6e
topology: v6e:2x2x1
jax: 0.10.0
libtpu: 0.0.40
codegen_flags: <defaults>
</compile_context>

<pallas_src>
import functools

import jax
import jax.numpy as jnp
from jax.experimental import pallas as pl
from jax.experimental.pallas import tpu as pltpu


def _round_up(n, m):
    return (n + m - 1) // m * m


def _cdiv(a, b):
    return (a + b - 1) // b


# Sublane packing (rows per vreg tile) by element size.
_SUBLANE = {4: 8, 2: 16, 1: 32}


def _pick_tile_rows(rows, f_padded, itemsize):
    """Largest sublane-aligned row tile whose pipelined footprint fits VMEM."""
    sublane = _SUBLANE.get(itemsize, 8)
    # Pipeline VMEM ~= (input + output) x double-buffer = 4 * tile * Fp * itemsize.
    # Keep <= 32 MiB: comfortable on v7x (64 MiB physical per TC) and well inside
    # the raised 48 MiB scoped limit on v5e/v6e (128 MiB physical).
    tile_budget = 32 * 1024 * 1024
    tile = min(1024, max(1, tile_budget // (4 * f_padded * itemsize)))
    # No point tiling past the (sublane-rounded) row count.
    tile = min(tile, _round_up(rows, sublane))
    # Keep >= ~8 grid steps when there is enough work so the "parallel" grid
    # axis gives both v7x TensorCores something to do.
    if rows >= 8 * sublane:
        tile = min(tile, _round_up(_cdiv(rows, 8), sublane))
    tile = max(sublane, (tile // sublane) * sublane)
    return tile


def _layernorm_kernel(x_ref, gamma_ref, beta_ref, o_ref, *, features, eps):
    # x_ref: (TR, Fp) tile of rows; Fp >= features. Padded columns are zero and
    # contribute nothing to sum / sum-of-squares, so using the true `features`
    # in the denominators keeps the math exact.
    x = x_ref[...].astype(jnp.float32)

    # Fused single pass: sum and sum of squares (2 cross-lane reductions, one
    # sweep over the data).
    s = jnp.sum(x, axis=-1, keepdims=True)
    ss = jnp.sum(x * x, axis=-1, keepdims=True)

    inv_f = jnp.float32(1.0 / features)
    # torch.var default is unbiased (ddof=1).  (features=1 is degenerate;
    # torch yields NaN there — we simply avoid the Python ZeroDivisionError.)
    inv_fm1 = jnp.float32(1.0 / max(features - 1, 1))

    mean = s * inv_f
    var = (ss - s * s * inv_f) * inv_fm1
    std = jnp.sqrt(var + 1e-5)

    # One reciprocal per row, then a broadcast multiply (EUP handles the
    # reciprocal; avoids dividing every element).
    inv = pl.reciprocal(std + eps, approx=False)

    y = (x - mean) * inv
    gamma = gamma_ref[...].astype(jnp.float32)  # (1, Fp) broadcasts over rows
    beta = beta_ref[...].astype(jnp.float32)
    o_ref[...] = (gamma * y + beta).astype(o_ref.dtype)


def layer_norm(x, gamma, beta, *, eps=1e-6, tile_rows=None):
    """LayerNorm over the last dim. x: (..., F); gamma/beta broadcastable to (F,)."""
    orig_shape = x.shape
    features = orig_shape[-1]
    x2 = x.reshape(-1, features)
    rows = x2.shape[0]
    itemsize = jnp.dtype(x.dtype).itemsize

    # Lane-dense feature dim: pad F to a multiple of 128 (no-op for typical
    # transformer widths 768/1024/4096; exact for any F — see kernel comment).
    f_padded = _round_up(features, 128)
    # TODO(synk): if a single row (f_padded * itemsize) ever exceeds VMEM,
    # a feature-dim tiled two-pass variant would be needed.

    if tile_rows is None:
        tile_rows = _pick_tile_rows(rows, f_padded, itemsize)
    rows_padded = _round_up(rows, tile_rows)

    if (rows_padded, f_padded) != (rows, features):
        x2 = jnp.pad(x2, ((0, rows_padded - rows), (0, f_padded - features)))

    gamma2 = jnp.pad(gamma.reshape(1, features), ((0, 0), (0, f_padded - features)))
    beta2 = jnp.pad(beta.reshape(1, features), ((0, 0), (0, f_padded - features)))

    kernel = functools.partial(_layernorm_kernel, features=features, eps=eps)

    out = pl.pallas_call(
        kernel,
        out_shape=jax.ShapeDtypeStruct((rows_padded, f_padded), x.dtype),
        grid_spec=pltpu.PrefetchScalarGridSpec(
            num_scalar_prefetch=0,
            grid=(rows_padded // tile_rows,),
            in_specs=[
                pl.BlockSpec((tile_rows, f_padded), lambda i: (i, 0)),
                # gamma/beta block index is constant across the grid, so the
                # pipeline fetches them once and keeps them resident.
                pl.BlockSpec((1, f_padded), lambda i: (0, 0)),
                pl.BlockSpec((1, f_padded), lambda i: (0, 0)),
            ],
            out_specs=pl.BlockSpec((tile_rows, f_padded), lambda i: (i, 0)),
        ),
        compiler_params=pltpu.CompilerParams(
            dimension_semantics=("parallel",),
            vmem_limit_bytes=48 * 1024 * 1024,
        ),
    )(x2, gamma2, beta2)

    if (rows_padded, f_padded) != (rows, features):
        out = out[:rows, :features]
    return out.reshape(orig_shape)


def _reference(x, gamma, beta, eps=1e-6):
    xf = x.astype(jnp.float32)
    features = xf.shape[-1]
    mean = jnp.mean(xf, axis=-1, keepdims=True)
    var = jnp.var(xf, axis=-1, keepdims=True, ddof=1)
    std = jnp.sqrt(var + 1e-5)
    y = (xf - mean) / (std + eps)
    bshape = (1,) * (xf.ndim - 1) + (features,)
    return (gamma.astype(jnp.float32).reshape(bshape) * y
            + beta.astype(jnp.float32).reshape(bshape))


if __name__ == "__main__":
    key = jax.random.PRNGKey(0)
    k1, k2, k3 = jax.random.split(key, 3)

    # Case 1: small hidden (F=32 < 128) -> exercises the lane-padding path.
    x1 = jax.random.normal(k1, (2, 8, 32), dtype=jnp.float32)
    g1 = jnp.ones((32,), jnp.float32)
    b1 = jnp.zeros((32,), jnp.float32)
    o1 = jax.block_until_ready(layer_norm(x1, g1, b1))
    r1 = _reference(x1, g1, b1)
    assert o1.shape == x1.shape and o1.dtype == x1.dtype
    assert jnp.allclose(o1, r1, atol=1e-5, rtol=1e-5), "case1 mismatch"

    # Case 2: lane-dense hidden (F=256), 4-D input (module's dim_ > 3 branch),
    # non-trivial affine params.
    x2 = jax.random.normal(k2, (2, 2, 8, 256), dtype=jnp.float32)
    g2 = jax.random.normal(k3, (256,), dtype=jnp.float32)
    b2 = 0.1 * jnp.arange(256, dtype=jnp.float32)
    o2 = jax.block_until_ready(layer_norm(x2, g2, b2))
    r2 = _reference(x2, g2, b2)
    assert o2.shape == x2.shape and o2.dtype == x2.dtype
    assert jnp.allclose(o2, r2, atol=1e-5, rtol=1e-5), "case2 mismatch"

    # Case 3: bf16 I/O stays bf16 end-to-end (f32 accumulation in-kernel).
    x3 = jax.random.normal(k1, (2, 8, 128), dtype=jnp.bfloat16)
    g3 = jnp.ones((128,), jnp.float32)
    b3 = jnp.zeros((128,), jnp.float32)
    o3 = jax.block_until_ready(layer_norm(x3, g3, b3))
    r3 = _reference(x3, g3, b3)
    assert o3.dtype == jnp.bfloat16 and o3.shape == x3.shape
    assert jnp.allclose(o3.astype(jnp.float32), r3, atol=3e-2, rtol=0), "case3 mismatch"

    print("KERNEL_OK")
</pallas_src>

<mosaic_0001>
module attributes {stable_mosaic.version = 11 : i64} {
  func.func @_layernorm_kernel(%arg0: i32, %arg1: memref<16x128xf32, #tpu.memory_space<vmem>>, %arg2: memref<1x128xf32, #tpu.memory_space<vmem>>, %arg3: memref<1x128xf32, #tpu.memory_space<vmem>>, %arg4: memref<16x128xf32, #tpu.memory_space<vmem>>) attributes {dimension_semantics = [#tpu.dimension_semantics<parallel>], iteration_bounds = array<i64: 1>, scalar_prefetch = 0 : i64, scratch_operands = 0 : i64, tpu.core_type = #tpu.core_type<tc>, window_params = [{transform_indices = @transform_0, window_bounds = array<i64: 16, 128>}, {pipeline_mode = #tpu.pipeline_mode<synchronous>, transform_indices = @transform_1, window_bounds = array<i64: 1, 128>}, {pipeline_mode = #tpu.pipeline_mode<synchronous>, transform_indices = @transform_2, window_bounds = array<i64: 1, 128>}, {transform_indices = @transform_3, window_bounds = array<i64: 16, 128>}]} {
    %c0 = arith.constant 0 : index
    %c0_0 = arith.constant 0 : index
    %0 = vector.load %arg1[%c0, %c0_0] : memref<16x128xf32, #tpu.memory_space<vmem>>, vector<16x128xf32>
    %cst = arith.constant dense<0.000000e+00> : vector<16xf32>
    %1 = vector.multi_reduction <add>, %0, %cst [1] : vector<16x128xf32> to vector<16xf32>
    %2 = vector.shape_cast %1 : vector<16xf32> to vector<16x1xf32>
    %3 = arith.mulf %0, %0 : vector<16x128xf32>
    %cst_1 = arith.constant dense<0.000000e+00> : vector<16xf32>
    %4 = vector.multi_reduction <add>, %3, %cst_1 [1] : vector<16x128xf32> to vector<16xf32>
    %5 = vector.shape_cast %4 : vector<16xf32> to vector<16x1xf32>
    %cst_2 = arith.constant 3.125000e-02 : f32
    %6 = vector.broadcast %cst_2 : f32 to vector<16x1xf32>
    %7 = arith.mulf %2, %6 : vector<16x1xf32>
    %8 = arith.mulf %2, %2 : vector<16x1xf32>
    %cst_3 = arith.constant 3.125000e-02 : f32
    %9 = vector.broadcast %cst_3 : f32 to vector<16x1xf32>
    %10 = arith.mulf %8, %9 : vector<16x1xf32>
    %11 = arith.subf %5, %10 : vector<16x1xf32>
    %cst_4 = arith.constant 0.0322580636 : f32
    %12 = vector.broadcast %cst_4 : f32 to vector<16x1xf32>
    %13 = arith.mulf %11, %12 : vector<16x1xf32>
    %cst_5 = arith.constant 9.99999974E-6 : f32
    %14 = vector.broadcast %cst_5 : f32 to vector<16x1xf32>
    %15 = arith.addf %13, %14 : vector<16x1xf32>
    %16 = math.sqrt %15 : vector<16x1xf32>
    %cst_6 = arith.constant 9.99999997E-7 : f32
    %17 = vector.broadcast %cst_6 : f32 to vector<16x1xf32>
    %18 = arith.addf %16, %17 : vector<16x1xf32>
    %19 = tpu.reciprocal %18 : vector<16x1xf32> -> vector<16x1xf32>
    %20 = vector.broadcast %7 : vector<16x1xf32> to vector<16x128xf32>
    %21 = arith.subf %0, %20 : vector<16x128xf32>
    %22 = vector.broadcast %19 : vector<16x1xf32> to vector<16x128xf32>
    %23 = arith.mulf %21, %22 : vector<16x128xf32>
    %c0_7 = arith.constant 0 : index
    %c0_8 = arith.constant 0 : index
    %24 = vector.load %arg2[%c0_7, %c0_8] : memref<1x128xf32, #tpu.memory_space<vmem>>, vector<1x128xf32>
    %c0_9 = arith.constant 0 : index
    %c0_10 = arith.constant 0 : index
    %25 = vector.load %arg3[%c0_9, %c0_10] : memref<1x128xf32, #tpu.memory_space<vmem>>, vector<1x128xf32>
    %26 = vector.broadcast %24 : vector<1x128xf32> to vector<16x128xf32>
    %27 = arith.mulf %26, %23 : vector<16x128xf32>
    %28 = vector.broadcast %25 : vector<1x128xf32> to vector<16x128xf32>
    %29 = arith.addf %27, %28 : vector<16x128xf32>
    %c0_11 = arith.constant 0 : index
    %c0_12 = arith.constant 0 : index
    %30 = vector.load %arg4[%c0_11, %c0_12] : memref<16x128xf32, #tpu.memory_space<vmem>>, vector<16x128xf32>
    tpu.vector_store %arg4[%c0_11, %c0_12], %29 {strides = array<i32>} : memref<16x128xf32, #tpu.memory_space<vmem>>, vector<16x128xf32>,
    return
  }
  func.func @transform_0(%arg0: i32) -> (i32, i32) {
    %c0_i32 = arith.constant 0 : i32
    %c0_i32_0 = arith.constant 0 : i32
    return %arg0, %c0_i32 : i32, i32
  }
  func.func @transform_1(%arg0: i32) -> (i32, i32) {
    %c0_i32 = arith.constant 0 : i32
    %c0_i32_0 = arith.constant 0 : i32
    %c0_i32_1 = arith.constant 0 : i32
    return %c0_i32, %c0_i32_0 : i32, i32
  }
  func.func @transform_2(%arg0: i32) -> (i32, i32) {
    %c0_i32 = arith.constant 0 : i32
    %c0_i32_0 = arith.constant 0 : i32
    %c0_i32_1 = arith.constant 0 : i32
    return %c0_i32, %c0_i32_0 : i32, i32
  }
  func.func @transform_3(%arg0: i32) -> (i32, i32) {
    %c0_i32 = arith.constant 0 : i32
    %c0_i32_0 = arith.constant 0 : i32
    return %arg0, %c0_i32 : i32, i32
  }
}

</mosaic_0001>

<llo_original>
// kernel: tpu_custom_call.1
$region0: #{tpu_custom_call.1}
  #allocation0 [shape = 'u32[]', space=smem, size = 0x4, offset = 0x4, fixed_abs, tag = 'smem constant byte address 0x4 - core index']
  #allocation1 [shape = 'u32[144,128]{1,0:T(1,128)}', space=vmem, size = 0x12000, scoped, tag = 'internal scratch']
  %s0 = inlined_call_operand.hbm [shape: f32[16,128], index: 0, kind: input, shape index: {}]
  %s1 = inlined_call_operand.vmem [shape: f32[1,128], index: 1, kind: input, shape index: {}]
  %s2 = inlined_call_operand.vmem [shape: f32[1,128], index: 2, kind: input, shape index: {}]
  %s3 = inlined_call_operand.hbm [shape: f32[16,128], index: 3, kind: output, shape index: {}]
  %s4 = sld [smem:[#allocation0]]
  $region26: #{tpu_custom_call.1} parent=0
    _
  %s6 = ssub.s32 1, %s4
  %s7 = scalar_select 0, %s6, %s4
  $region1: #{tpu_custom_call.1} parent=0
    #allocation2 [shape = 'u8[8192]{0}', space=vmem, size = 0x2000, scoped, tag = 'input window, operand 0, single buffered']
    #allocation3 [shape = 's32[1]{0}', space=sflag, size = 0x4, scoped, tag = 'scoped memory for tpu_custom_call.1']
    #allocation4 [shape = 's32[1]{0}', space=sflag, size = 0x4, scoped, tag = 'scoped memory for tpu_custom_call.1']
    #allocation5 [shape = 'u8[8192]{0}', space=vmem, size = 0x2000, scoped, tag = 'output window, operand 0, single buffered']
    %8 = vsyncpa [#allocation3], 0
    %9 = vsyncpa [#allocation4], 0
    // Predicated region
    $region2: #{tpu_custom_call.1} parent=1 // pred_check
      _
    $region3: #{tpu_custom_call.1} parent=1 // pred_check_branch
      %11 = sbr.rel (0) target = $region5
    $region4: #{tpu_custom_call.1} parent=1 // pred_region
      %s13 = ssub.s32 256, 256
      %14 = vsyncadd [#allocation3], %s13
      %s15 = sshll.u32 [#allocation2], 4
      %s16 = int_to_ptr.vmem [resolvable:$true] %s15
      %21 = dma.hbm_to_vmem [thread:$0]  %s0, 256, %s16, [#allocation3], 128, 128, 8
    $region5: #{tpu_custom_call.1} parent=1 // pred_fallthru
      _
    // Predicated region
    $region6: #{tpu_custom_call.1} parent=1 // pred_check
      _
    $region7: #{tpu_custom_call.1} parent=1 // pred_check_branch
      %23 = sbr.rel (0) target = $region9
    $region8: #{tpu_custom_call.1} parent=1 // pred_region
      _
    $region9: #{tpu_custom_call.1} parent=1 // pred_fallthru
      _
    // Predicated region
    $region10: #{tpu_custom_call.1} parent=1 // pred_check
      _
    $region11: #{tpu_custom_call.1} parent=1 // pred_check_branch
      %25 = sbr.rel (0) target = $region13
    $region12: #{tpu_custom_call.1} parent=1 // pred_region
      _
    $region13: #{tpu_custom_call.1} parent=1 // pred_fallthru
      _
    // Predicated region
    $region14: #{tpu_custom_call.1} parent=1 // pred_check
      _
    $region15: #{tpu_custom_call.1} parent=1 // pred_check_branch
      %27 = sbr.rel (0) target = $region17
    $region16: #{tpu_custom_call.1} parent=1 // pred_region
      %28 = dma.done [#allocation3], 256
    $region17: #{tpu_custom_call.1} parent=1 // pred_fallthru
      _
    %v29 = vld [vmem:[#allocation2] sm:$0xff]
    %v30 = vld [vmem:[#allocation2 + $0x8] sm:$0xff]
    %31 = vadd.xlane.f32.xlu0 %v29
    %v32 = vpop.xlane.xlu0 %31
    %33 = vadd.xlane.f32.xlu0 %v30
    %v34 = vpop.xlane.xlu0 %33
    %v35 = vmul.f32 %v29, %v29
    %v36 = vmul.f32 %v30, %v30
    %37 = vadd.xlane.f32.xlu0 %v35
    %v38 = vpop.xlane.xlu0 %37
    %39 = vadd.xlane.f32.xlu0 %v36
    %v40 = vpop.xlane.xlu0 %39
    %v41 = vmul.f32 %v32, 0.03125
    %v42 = vmul.f32 %v34, 0.03125
    %v43 = vmul.f32 %v32, %v32
    %v44 = vmul.f32 %v34, %v34
    %v45 = vmul.f32 %v43, 0.03125
    %v46 = vmul.f32 %v44, 0.03125
    %v47 = vsub.f32 %v38, %v45
    %v48 = vsub.f32 %v40, %v46
    %v49 = vmul.f32 %v47, 0.032258064
    %v50 = vmul.f32 %v48, 0.032258064
    %v51 = vadd.f32 %v49, 1e-05
    %v52 = vadd.f32 %v50, 1e-05
    %v53 = vrsqrt.pop %v51
    %v54 = vmul.f32 %v51, %v53
    %vm55 = vcmp.eq.f32.partialorder %v51, inf
    %v56 = vsel %vm55, %v51, %v54
    %vm57 = vcmp.eq.f32.partialorder %v51, 0.0
    %v58 = vand.u32 %v51, 2147483648
    %v59 = vsel %vm57, %v58, %v56
    %v60 = vrsqrt.pop %v52
    %v61 = vmul.f32 %v52, %v60
    %vm62 = vcmp.eq.f32.partialorder %v52, inf
    %v63 = vsel %vm62, %v52, %v61
    %vm64 = vcmp.eq.f32.partialorder %v52, 0.0
    %v65 = vand.u32 %v52, 2147483648
    %v66 = vsel %vm64, %v65, %v63
    %v67 = vadd.f32 %v59, 1e-06
    %v68 = vadd.f32 %v66, 1e-06
    %v69 = vrcp.pop %v67
    %v70 = vrcp.pop %v68
    %v71 = vsub.f32 %v29, %v41
    %v72 = vsub.f32 %v30, %v42
    %v73 = vmul.f32 %v71, %v69
    %v74 = vmul.f32 %v72, %v70
    %v75 = vld [vmem:[%s1] sm:$0x1]
    %v76 = vld [vmem:[%s2] sm:$0x1]
    %v78 = vlaneseq
    %v79 = vshrl.u32 %v78, 7
    %v80 = vsub.s32 0, %v79
    %v81 = vrot.slane %v75, %v80
    %v83 = vmul.f32 %v81, %v73
    %v84 = vmul.f32 %v81, %v74
    %v86 = vlaneseq
    %v87 = vshrl.u32 %v86, 7
    %v88 = vsub.s32 0, %v87
    %v89 = vrot.slane %v76, %v88
    %v91 = vadd.f32 %v83, %v89
    %v92 = vadd.f32 %v84, %v89
    %93 = vst [vmem:[#allocation5] sm:$0xff] %v91
    %94 = vst [vmem:[#allocation5 + $0x8] sm:$0xff] %v92
    // Predicated region
    $region18: #{tpu_custom_call.1} parent=1 // pred_check
      _
    $region19: #{tpu_custom_call.1} parent=1 // pred_check_branch
      %96 = sbr.rel (0) target = $region21
    $region20: #{tpu_custom_call.1} parent=1 // pred_region
      %s98 = ssub.s32 256, 256
      %99 = vsyncadd [#allocation4], %s98
      %s100 = sshll.u32 [#allocation5], 4
      %s101 = int_to_ptr.vmem [resolvable:$true] %s100
      %106 = dma.vmem_to_hbm [thread:$0]  %s101, 256, %s3, [#allocation4], 128, 128, 8
    $region21: #{tpu_custom_call.1} parent=1 // pred_fallthru
      _
    // Predicated region
    $region22: #{tpu_custom_call.1} parent=1 // pred_check
      _
    $region23: #{tpu_custom_call.1} parent=1 // pred_check_branch
      %108 = sbr.rel (0) target = $region25
    $region24: #{tpu_custom_call.1} parent=1 // pred_region
      %109 = dma.done [#allocation4], 256
    $region25: #{tpu_custom_call.1} parent=1 // pred_fallthru
      _
    %110 = vsyncpa [#allocation3], 1
    %111 = vsyncpa [#allocation4], 1

</llo_original>
